<compile_context>
chip_gen: v5e
topology: v5e:2x2
jax: 0.10.0
libtpu: 0.0.40
codegen_flags: <defaults>
</compile_context>

<pallas_src>
import functools

import jax
import jax.numpy as jnp
from jax import lax
from jax.experimental import pallas as pl
from jax.experimental.pallas import tpu as pltpu


def _round_up(x, m):
    return (x + m - 1) // m * m


# ----------------------------------------------------------------------------
# Fused LSTM + MDN kernel (single invocation, no grid).
# Gate order matches PyTorch nn.LSTM: (i, f, g, o).
# x_ref is time-major flattened: row index = t * batch + b.
# ----------------------------------------------------------------------------
def _lstm_mdn_kernel(x_ref, wih_ref, whh_ref, b_ref, wmdn_ref, bmdn_ref,
                     out_ref, h_seq_ref, *, seq_len, batch,
                     col_pi, col_sig, col_mu, col_pho):
    H = whh_ref.shape[0]

    # Hoisted input projection: ONE matmul for all timesteps (off the serial path).
    gates_x = (
        jnp.dot(x_ref[...], wih_ref[...], preferred_element_type=jnp.float32)
        + b_ref[...])                                    # (S*B, 4H)

    whh = whh_ref[...]                                   # (H, 4H), loaded once

    # tanh only on the g-gate lane block [2H, 3H); sigmoid elsewhere.
    lane = lax.broadcasted_iota(jnp.int32, (batch, 4 * H), 1)
    g_gate = (lane >= 2 * H) & (lane < 3 * H)

    h = jnp.zeros((batch, H), jnp.float32)
    c = jnp.zeros((batch, H), jnp.float32)
    for t in range(seq_len):                             # fully unrolled recurrence
        g = gates_x[t * batch:(t + 1) * batch, :] + jnp.dot(
            h, whh, preferred_element_type=jnp.float32)  # (B, 4H)
        act = jnp.where(g_gate, jnp.tanh(g), jax.nn.sigmoid(g))
        i_g = act[:, 0 * H:1 * H]
        f_g = act[:, 1 * H:2 * H]
        g_g = act[:, 2 * H:3 * H]
        o_g = act[:, 3 * H:4 * H]
        c = f_g * c + i_g * g_g
        h = o_g * jnp.tanh(c)
        h_seq_ref[pl.ds(t * batch, batch), :] = h        # stage for the MDN matmul

    # MDN head: one fused matmul over all S*B rows, output lane-padded to 128.
    z = (jnp.dot(h_seq_ref[...], wmdn_ref[...],
                 preferred_element_type=jnp.float32)
         + bmdn_ref[...])                                # (S*B, P)

    col = lax.broadcasted_iota(jnp.int32, z.shape, 1)
    pi_m = col < col_pi
    sig_m = (col >= col_pi) & (col < col_sig)
    mu_m = (col >= col_sig) & (col < col_mu)
    pho_m = (col >= col_mu) & (col < col_pho)

    # softmax over the pi columns only (masked, numerically stable)
    pi_logits = jnp.where(pi_m, z, -jnp.inf)
    m = jnp.max(pi_logits, axis=-1, keepdims=True)
    e = jnp.exp(pi_logits - m)
    pi_vals = e / jnp.sum(e, axis=-1, keepdims=True)

    sig_vals = jnp.exp(z)                                # used only on sigma lanes
    pho_vals = jnp.tanh(z)                               # used only on pho lanes

    out_ref[...] = jnp.where(
        pi_m, pi_vals,
        jnp.where(sig_m, sig_vals,
                  jnp.where(mu_m, z,
                            jnp.where(pho_m, pho_vals, 0.0))))


# ----------------------------------------------------------------------------
# One-time parameter preparation (PyTorch layout -> kernel layout).
# Fused MDN weight columns: [pi (K) | sigma (K*O) | mu (K*O) | pho (K) | pad].
# ----------------------------------------------------------------------------
def prepare_params(raw):
    H = raw["w_hh"].shape[1]
    wih_t = jnp.transpose(raw["w_ih"]).astype(jnp.float32)   # (I, 4H)
    whh_t = jnp.transpose(raw["w_hh"]).astype(jnp.float32)   # (H, 4H)
    bias = (raw["b_ih"] + raw["b_hh"]).reshape(1, 4 * H).astype(jnp.float32)

    w_cat = jnp.concatenate(
        [raw["w_pi"], raw["w_sigma"], raw["w_mu"], raw["w_pho"]], axis=0)  # (C, H)
    b_cat = jnp.concatenate(
        [raw["b_pi"], raw["b_sigma"], raw["b_mu"], raw["b_pho"]])          # (C,)
    C = w_cat.shape[0]
    P = _round_up(max(C, 128), 128)                      # lane-dense output width
    w_pad = jnp.zeros((H, P), jnp.float32).at[:, :C].set(jnp.transpose(w_cat))
    b_pad = jnp.zeros((1, P), jnp.float32).at[:, :C].set(b_cat)
    return dict(wih_t=wih_t, whh_t=whh_t, bias=bias, w_mdn=w_pad, b_mdn=b_pad)


# ----------------------------------------------------------------------------
# Forward wrapper
# ----------------------------------------------------------------------------
def lstm_mdn_forward(kparams, minibatch, *, num_gaussians, out_features):
    B, S, I = minibatch.shape
    H = kparams["whh_t"].shape[0]
    P = kparams["w_mdn"].shape[1]
    K, O = num_gaussians, out_features
    c1 = K                       # end of pi columns
    c2 = K + K * O               # end of sigma columns
    c3 = K + 2 * K * O           # end of mu columns
    c4 = 2 * K + 2 * K * O       # end of pho columns

    # tiny (B*S*I floats) time-major flatten; all heavy work stays in the kernel
    x_tm = jnp.transpose(minibatch, (1, 0, 2)).reshape(S * B, I)

    kernel = functools.partial(
        _lstm_mdn_kernel, seq_len=S, batch=B,
        col_pi=c1, col_sig=c2, col_mu=c3, col_pho=c4)

    out = pl.pallas_call(
        kernel,
        out_shape=jax.ShapeDtypeStruct((S * B, P), jnp.float32),
        scratch_shapes=[pltpu.VMEM((S * B, H), jnp.float32)],
    )(x_tm, kparams["wih_t"], kparams["whh_t"], kparams["bias"],
      kparams["w_mdn"], kparams["b_mdn"])

    out = jnp.transpose(out.reshape(S, B, P), (1, 0, 2))     # (B, S, P), tiny
    pi = out[..., 0:c1]
    sigma = out[..., c1:c2].reshape(B, S, K, O)
    mu = out[..., c2:c3].reshape(B, S, K, O)
    pho = out[..., c3:c4]
    return pi, sigma, mu, pho


# ----------------------------------------------------------------------------
# PyTorch-layout parameter init + pure-JAX reference for validation
# ----------------------------------------------------------------------------
def init_params(key, input_size, hidden, num_gaussians, out_features):
    K, O, H, I = num_gaussians, out_features, hidden, input_size
    ks = jax.random.split(key, 12)
    s = 0.1
    return dict(
        w_ih=s * jax.random.normal(ks[0], (4 * H, I), jnp.float32),
        w_hh=s * jax.random.normal(ks[1], (4 * H, H), jnp.float32),
        b_ih=s * jax.random.normal(ks[2], (4 * H,), jnp.float32),
        b_hh=s * jax.random.normal(ks[3], (4 * H,), jnp.float32),
        w_pi=s * jax.random.normal(ks[4], (K, H), jnp.float32),
        b_pi=s * jax.random.normal(ks[5], (K,), jnp.float32),
        w_sigma=s * jax.random.normal(ks[6], (K * O, H), jnp.float32),
        b_sigma=s * jax.random.normal(ks[7], (K * O,), jnp.float32),
        w_mu=s * jax.random.normal(ks[8], (K * O, H), jnp.float32),
        b_mu=s * jax.random.normal(ks[9], (K * O,), jnp.float32),
        w_pho=s * jax.random.normal(ks[10], (K, H), jnp.float32),
        b_pho=s * jax.random.normal(ks[11], (K,), jnp.float32),
    )


def reference_forward(raw, x, num_gaussians, out_features):
    B, S, _ = x.shape
    H = raw["w_hh"].shape[1]
    K, O = num_gaussians, out_features

    def step(carry, x_t):
        h, c = carry
        g = (x_t @ raw["w_ih"].T + raw["b_ih"] + h @ raw["w_hh"].T + raw["b_hh"])
        i = jax.nn.sigmoid(g[:, 0 * H:1 * H])
        f = jax.nn.sigmoid(g[:, 1 * H:2 * H])
        gg = jnp.tanh(g[:, 2 * H:3 * H])
        o = jax.nn.sigmoid(g[:, 3 * H:4 * H])
        c = f * c + i * gg
        h = o * jnp.tanh(c)
        return (h, c), h

    h0 = jnp.zeros((B, H), jnp.float32)
    c0 = jnp.zeros((B, H), jnp.float32)
    _, hs = lax.scan(step, (h0, c0), jnp.transpose(x, (1, 0, 2)))
    hs = jnp.transpose(hs, (1, 0, 2))                       # (B, S, H)

    pi = jax.nn.softmax(hs @ raw["w_pi"].T + raw["b_pi"], axis=-1)
    sigma = jnp.exp(hs @ raw["w_sigma"].T + raw["b_sigma"]).reshape(B, S, K, O)
    mu = (hs @ raw["w_mu"].T + raw["b_mu"]).reshape(B, S, K, O)
    pho = jnp.tanh(hs @ raw["w_pho"].T + raw["b_pho"])
    return pi, sigma, mu, pho


if __name__ == "__main__":
    Config = dict(input_size=2, input_features=32, out_features=2, num_gaussians=5)
    B, S = 4, 8
    K, O = Config["num_gaussians"], Config["out_features"]

    key = jax.random.PRNGKey(0)
    kp, kx = jax.random.split(key)
    raw = init_params(kp, Config["input_size"], Config["input_features"], K, O)
    kparams = prepare_params(raw)            # one-time weight layout conversion
    x = jax.random.normal(kx, (B, S, Config["input_size"]), jnp.float32)

    fwd = jax.jit(functools.partial(
        lstm_mdn_forward, num_gaussians=K, out_features=O))
    pi, sigma, mu, pho = fwd(kparams, x)
    jax.block_until_ready((pi, sigma, mu, pho))

    assert pi.shape == (B, S, K)
    assert sigma.shape == (B, S, K, O)
    assert mu.shape == (B, S, K, O)
    assert pho.shape == (B, S, K)
    # sanity: pi rows sum to 1, sigma > 0, |pho| <= 1
    assert jnp.allclose(jnp.sum(pi, axis=-1), 1.0, atol=1e-5)
    assert bool(jnp.all(sigma > 0.0))
    assert bool(jnp.all(jnp.abs(pho) <= 1.0))

    # numerical check against a pure-JAX reference of the same module
    rpi, rsigma, rmu, rpho = reference_forward(raw, x, K, O)
    for got, ref in ((pi, rpi), (sigma, rsigma), (mu, rmu), (pho, rpho)):
        assert jnp.allclose(got, ref, atol=2e-2, rtol=2e-2), float(
            jnp.max(jnp.abs(got - ref)))

    print("KERNEL_OK")
</pallas_src>

<mosaic_0001>
module attributes {stable_mosaic.version = 11 : i64} {
  func.func @_lstm_mdn_kernel(%arg0: memref<32x2xf32, #tpu.memory_space<vmem>>, %arg1: memref<2x128xf32, #tpu.memory_space<vmem>>, %arg2: memref<32x128xf32, #tpu.memory_space<vmem>>, %arg3: memref<1x128xf32, #tpu.memory_space<vmem>>, %arg4: memref<32x128xf32, #tpu.memory_space<vmem>>, %arg5: memref<1x128xf32, #tpu.memory_space<vmem>>, %arg6: memref<32x128xf32, #tpu.memory_space<vmem>>, %arg7: memref<32x32xf32, #tpu.memory_space<vmem>>) attributes {dimension_semantics = [], scalar_prefetch = 0 : i64, scratch_operands = 1 : i64, tpu.core_type = #tpu.core_type<tc>} {
    %c0 = arith.constant 0 : index
    %c0_0 = arith.constant 0 : index
    %0 = vector.load %arg0[%c0, %c0_0] : memref<32x2xf32, #tpu.memory_space<vmem>>, vector<32x2xf32>
    %c0_1 = arith.constant 0 : index
    %c0_2 = arith.constant 0 : index
    %1 = vector.load %arg1[%c0_1, %c0_2] : memref<2x128xf32, #tpu.memory_space<vmem>>, vector<2x128xf32>
    %cst = arith.constant dense<0.000000e+00> : vector<32x128xf32>
    %2 = tpu.matmul %0, %1, %cst {dimension_numbers = #tpu.dot_dimension_numbers<[1], [0], [0], [1], [0, 0, 1, 1], [], []>} : vector<32x2xf32>, vector<2x128xf32>, vector<32x128xf32> -> vector<32x128xf32>
    %c0_3 = arith.constant 0 : index
    %c0_4 = arith.constant 0 : index
    %3 = vector.load %arg3[%c0_3, %c0_4] : memref<1x128xf32, #tpu.memory_space<vmem>>, vector<1x128xf32>
    %4 = vector.broadcast %3 : vector<1x128xf32> to vector<32x128xf32>
    %5 = arith.addf %2, %4 : vector<32x128xf32>
    %c0_5 = arith.constant 0 : index
    %c0_6 = arith.constant 0 : index
    %6 = vector.load %arg2[%c0_5, %c0_6] : memref<32x128xf32, #tpu.memory_space<vmem>>, vector<32x128xf32>
    %7 = tpu.iota {dimensions = array<i32: 1>} : vector<4x128xi32>
    %c64_i32 = arith.constant 64 : i32
    %8 = vector.broadcast %c64_i32 : i32 to vector<4x128xi32>
    %9 = arith.cmpi sge, %7, %8 : vector<4x128xi32>
    %c96_i32 = arith.constant 96 : i32
    %10 = vector.broadcast %c96_i32 : i32 to vector<4x128xi32>
    %11 = arith.cmpi slt, %7, %10 : vector<4x128xi32>
    %12 = arith.andi %9, %11 : vector<4x128xi1>
    %cst_7 = arith.constant 0.000000e+00 : f32
    %13 = vector.broadcast %cst_7 : f32 to vector<4x32xf32>
    %cst_8 = arith.constant 0.000000e+00 : f32
    %14 = vector.broadcast %cst_8 : f32 to vector<4x32xf32>
    %15 = vector.extract_strided_slice %5 {offsets = [0, 0], sizes = [4, 128], strides = [1, 1]} : vector<32x128xf32> to vector<4x128xf32>
    %cst_9 = arith.constant dense<0.000000e+00> : vector<4x128xf32>
    %16 = tpu.matmul %13, %6, %cst_9 {dimension_numbers = #tpu.dot_dimension_numbers<[1], [0], [0], [1], [0, 0, 1, 1], [], []>} : vector<4x32xf32>, vector<32x128xf32>, vector<4x128xf32> -> vector<4x128xf32>
    %17 = arith.addf %15, %16 : vector<4x128xf32>
    %18 = math.tanh %17 : vector<4x128xf32>
    %19 = arith.negf %17 : vector<4x128xf32>
    %20 = math.exp %19 : vector<4x128xf32>
    %cst_10 = arith.constant 1.000000e+00 : f32
    %21 = vector.broadcast %cst_10 : f32 to vector<4x128xf32>
    %22 = arith.addf %21, %20 : vector<4x128xf32>
    %23 = arith.divf %21, %22 : vector<4x128xf32>
    %24 = arith.select %12, %18, %23 : vector<4x128xi1>, vector<4x128xf32>
    %25 = vector.extract_strided_slice %24 {offsets = [0, 0], sizes = [4, 32], strides = [1, 1]} : vector<4x128xf32> to vector<4x32xf32>
    %26 = vector.extract_strided_slice %24 {offsets = [0, 32], sizes = [4, 32], strides = [1, 1]} : vector<4x128xf32> to vector<4x32xf32>
    %27 = vector.extract_strided_slice %24 {offsets = [0, 64], sizes = [4, 32], strides = [1, 1]} : vector<4x128xf32> to vector<4x32xf32>
    %28 = vector.extract_strided_slice %24 {offsets = [0, 96], sizes = [4, 32], strides = [1, 1]} : vector<4x128xf32> to vector<4x32xf32>
    %29 = arith.mulf %26, %14 : vector<4x32xf32>
    %30 = arith.mulf %25, %27 : vector<4x32xf32>
    %31 = arith.addf %29, %30 : vector<4x32xf32>
    %32 = math.tanh %31 : vector<4x32xf32>
    %33 = arith.mulf %28, %32 : vector<4x32xf32>
    %c0_11 = arith.constant 0 : index
    %c0_12 = arith.constant 0 : index
    %34 = vector.load %arg7[%c0_11, %c0_12] : memref<32x32xf32, #tpu.memory_space<vmem>>, vector<4x32xf32>
    tpu.vector_store %arg7[%c0_11, %c0_12], %33 {strides = array<i32>} : memref<32x32xf32, #tpu.memory_space<vmem>>, vector<4x32xf32>,
    %35 = vector.extract_strided_slice %5 {offsets = [4, 0], sizes = [4, 128], strides = [1, 1]} : vector<32x128xf32> to vector<4x128xf32>
    %cst_13 = arith.constant dense<0.000000e+00> : vector<4x128xf32>
    %36 = tpu.matmul %33, %6, %cst_13 {dimension_numbers = #tpu.dot_dimension_numbers<[1], [0], [0], [1], [0, 0, 1, 1], [], []>} : vector<4x32xf32>, vector<32x128xf32>, vector<4x128xf32> -> vector<4x128xf32>
    %37 = arith.addf %35, %36 : vector<4x128xf32>
    %38 = math.tanh %37 : vector<4x128xf32>
    %39 = arith.negf %37 : vector<4x128xf32>
    %40 = math.exp %39 : vector<4x128xf32>
    %cst_14 = arith.constant 1.000000e+00 : f32
    %41 = vector.broadcast %cst_14 : f32 to vector<4x128xf32>
    %42 = arith.addf %41, %40 : vector<4x128xf32>
    %43 = arith.divf %41, %42 : vector<4x128xf32>
    %44 = arith.select %12, %38, %43 : vector<4x128xi1>, vector<4x128xf32>
    %45 = vector.extract_strided_slice %44 {offsets = [0, 0], sizes = [4, 32], strides = [1, 1]} : vector<4x128xf32> to vector<4x32xf32>
    %46 = vector.extract_strided_slice %44 {offsets = [0, 32], sizes = [4, 32], strides = [1, 1]} : vector<4x128xf32> to vector<4x32xf32>
    %47 = vector.extract_strided_slice %44 {offsets = [0, 64], sizes = [4, 32], strides = [1, 1]} : vector<4x128xf32> to vector<4x32xf32>
    %48 = vector.extract_strided_slice %44 {offsets = [0, 96], sizes = [4, 32], strides = [1, 1]} : vector<4x128xf32> to vector<4x32xf32>
    %49 = arith.mulf %46, %31 : vector<4x32xf32>
    %50 = arith.mulf %45, %47 : vector<4x32xf32>
    %51 = arith.addf %49, %50 : vector<4x32xf32>
    %52 = math.tanh %51 : vector<4x32xf32>
    %53 = arith.mulf %48, %52 : vector<4x32xf32>
    %c4 = arith.constant 4 : index
    %c0_15 = arith.constant 0 : index
    %54 = vector.load %arg7[%c4, %c0_15] : memref<32x32xf32, #tpu.memory_space<vmem>>, vector<4x32xf32>
    tpu.vector_store %arg7[%c4, %c0_15], %53 {strides = array<i32>} : memref<32x32xf32, #tpu.memory_space<vmem>>, vector<4x32xf32>,
    %55 = vector.extract_strided_slice %5 {offsets = [8, 0], sizes = [4, 128], strides = [1, 1]} : vector<32x128xf32> to vector<4x128xf32>
    %cst_16 = arith.constant dense<0.000000e+00> : vector<4x128xf32>
    %56 = tpu.matmul %53, %6, %cst_16 {dimension_numbers = #tpu.dot_dimension_numbers<[1], [0], [0], [1], [0, 0, 1, 1], [], []>} : vector<4x32xf32>, vector<32x128xf32>, vector<4x128xf32> -> vector<4x128xf32>
    %57 = arith.addf %55, %56 : vector<4x128xf32>
    %58 = math.tanh %57 : vector<4x128xf32>
    %59 = arith.negf %57 : vector<4x128xf32>
    %60 = math.exp %59 : vector<4x128xf32>
    %cst_17 = arith.constant 1.000000e+00 : f32
    %61 = vector.broadcast %cst_17 : f32 to vector<4x128xf32>
    %62 = arith.addf %61, %60 : vector<4x128xf32>
    %63 = arith.divf %61, %62 : vector<4x128xf32>
    %64 = arith.select %12, %58, %63 : vector<4x128xi1>, vector<4x128xf32>
    %65 = vector.extract_strided_slice %64 {offsets = [0, 0], sizes = [4, 32], strides = [1, 1]} : vector<4x128xf32> to vector<4x32xf32>
    %66 = vector.extract_strided_slice %64 {offsets = [0, 32], sizes = [4, 32], strides = [1, 1]} : vector<4x128xf32> to vector<4x32xf32>
    %67 = vector.extract_strided_slice %64 {offsets = [0, 64], sizes = [4, 32], strides = [1, 1]} : vector<4x128xf32> to vector<4x32xf32>
    %68 = vector.extract_strided_slice %64 {offsets = [0, 96], sizes = [4, 32], strides = [1, 1]} : vector<4x128xf32> to vector<4x32xf32>
    %69 = arith.mulf %66, %51 : vector<4x32xf32>
    %70 = arith.mulf %65, %67 : vector<4x32xf32>
    %71 = arith.addf %69, %70 : vector<4x32xf32>
    %72 = math.tanh %71 : vector<4x32xf32>
    %73 = arith.mulf %68, %72 : vector<4x32xf32>
    %c8 = arith.constant 8 : index
    %c0_18 = arith.constant 0 : index
    %74 = vector.load %arg7[%c8, %c0_18] : memref<32x32xf32, #tpu.memory_space<vmem>>, vector<4x32xf32>
    tpu.vector_store %arg7[%c8, %c0_18], %73 {strides = array<i32>} : memref<32x32xf32, #tpu.memory_space<vmem>>, vector<4x32xf32>,
    %75 = vector.extract_strided_slice %5 {offsets = [12, 0], sizes = [4, 128], strides = [1, 1]} : vector<32x128xf32> to vector<4x128xf32>
    %cst_19 = arith.constant dense<0.000000e+00> : vector<4x128xf32>
    %76 = tpu.matmul %73, %6, %cst_19 {dimension_numbers = #tpu.dot_dimension_numbers<[1], [0], [0], [1], [0, 0, 1, 1], [], []>} : vector<4x32xf32>, vector<32x128xf32>, vector<4x128xf32> -> vector<4x128xf32>
    %77 = arith.addf %75, %76 : vector<4x128xf32>
    %78 = math.tanh %77 : vector<4x128xf32>
    %79 = arith.negf %77 : vector<4x128xf32>
    %80 = math.exp %79 : vector<4x128xf32>
    %cst_20 = arith.constant 1.000000e+00 : f32
    %81 = vector.broadcast %cst_20 : f32 to vector<4x128xf32>
    %82 = arith.addf %81, %80 : vector<4x128xf32>
    %83 = arith.divf %81, %82 : vector<4x128xf32>
    %84 = arith.select %12, %78, %83 : vector<4x128xi1>, vector<4x128xf32>
    %85 = vector.extract_strided_slice %84 {offsets = [0, 0], sizes = [4, 32], strides = [1, 1]} : vector<4x128xf32> to vector<4x32xf32>
    %86 = vector.extract_strided_slice %84 {offsets = [0, 32], sizes = [4, 32], strides = [1, 1]} : vector<4x128xf32> to vector<4x32xf32>
    %87 = vector.extract_strided_slice %84 {offsets = [0, 64], sizes = [4, 32], strides = [1, 1]} : vector<4x128xf32> to vector<4x32xf32>
    %88 = vector.extract_strided_slice %84 {offsets = [0, 96], sizes = [4, 32], strides = [1, 1]} : vector<4x128xf32> to vector<4x32xf32>
    %89 = arith.mulf %86, %71 : vector<4x32xf32>
    %90 = arith.mulf %85, %87 : vector<4x32xf32>
    %91 = arith.addf %89, %90 : vector<4x32xf32>
    %92 = math.tanh %91 : vector<4x32xf32>
    %93 = arith.mulf %88, %92 : vector<4x32xf32>
    %c12 = arith.constant 12 : index
    %c0_21 = arith.constant 0 : index
    %94 = vector.load %arg7[%c12, %c0_21] : memref<32x32xf32, #tpu.memory_space<vmem>>, vector<4x32xf32>
    tpu.vector_store %arg7[%c12, %c0_21], %93 {strides = array<i32>} : memref<32x32xf32, #tpu.memory_space<vmem>>, vector<4x32xf32>,
    %95 = vector.extract_strided_slice %5 {offsets = [16, 0], sizes = [4, 128], strides = [1, 1]} : vector<32x128xf32> to vector<4x128xf32>
    %cst_22 = arith.constant dense<0.000000e+00> : vector<4x128xf32>
    %96 = tpu.matmul %93, %6, %cst_22 {dimension_numbers = #tpu.dot_dimension_numbers<[1], [0], [0], [1], [0, 0, 1, 1], [], []>} : vector<4x32xf32>, vector<32x128xf32>, vector<4x128xf32> -> vector<4x128xf32>
    %97 = arith.addf %95, %96 : vector<4x128xf32>
    %98 = math.tanh %97 : vector<4x128xf32>
    %99 = arith.negf %97 : vector<4x128xf32>
    %100 = math.exp %99 : vector<4x128xf32>
    %cst_23 = arith.constant 1.000000e+00 : f32
    %101 = vector.broadcast %cst_23 : f32 to vector<4x128xf32>
    %102 = arith.addf %101, %100 : vector<4x128xf32>
    %103 = arith.divf %101, %102 : vector<4x128xf32>
    %104 = arith.select %12, %98, %103 : vector<4x128xi1>, vector<4x128xf32>
    %105 = vector.extract_strided_slice %104 {offsets = [0, 0], sizes = [4, 32], strides = [1, 1]} : vector<4x128xf32> to vector<4x32xf32>
    %106 = vector.extract_strided_slice %104 {offsets = [0, 32], sizes = [4, 32], strides = [1, 1]} : vector<4x128xf32> to vector<4x32xf32>
    %107 = vector.extract_strided_slice %104 {offsets = [0, 64], sizes = [4, 32], strides = [1, 1]} : vector<4x128xf32> to vector<4x32xf32>
    %108 = vector.extract_strided_slice %104 {offsets = [0, 96], sizes = [4, 32], strides = [1, 1]} : vector<4x128xf32> to vector<4x32xf32>
    %109 = arith.mulf %106, %91 : vector<4x32xf32>
    %110 = arith.mulf %105, %107 : vector<4x32xf32>
    %111 = arith.addf %109, %110 : vector<4x32xf32>
    %112 = math.tanh %111 : vector<4x32xf32>
    %113 = arith.mulf %108, %112 : vector<4x32xf32>
    %c16 = arith.constant 16 : index
    %c0_24 = arith.constant 0 : index
    %114 = vector.load %arg7[%c16, %c0_24] : memref<32x32xf32, #tpu.memory_space<vmem>>, vector<4x32xf32>
    tpu.vector_store %arg7[%c16, %c0_24], %113 {strides = array<i32>} : memref<32x32xf32, #tpu.memory_space<vmem>>, vector<4x32xf32>,
    %115 = vector.extract_strided_slice %5 {offsets = [20, 0], sizes = [4, 128], strides = [1, 1]} : vector<32x128xf32> to vector<4x128xf32>
    %cst_25 = arith.constant dense<0.000000e+00> : vector<4x128xf32>
    %116 = tpu.matmul %113, %6, %cst_25 {dimension_numbers = #tpu.dot_dimension_numbers<[1], [0], [0], [1], [0, 0, 1, 1], [], []>} : vector<4x32xf32>, vector<32x128xf32>, vector<4x128xf32> -> vector<4x128xf32>
    %117 = arith.addf %115, %116 : vector<4x128xf32>
    %118 = math.tanh %117 : vector<4x128xf32>
    %119 = arith.negf %117 : vector<4x128xf32>
    %120 = math.exp %119 : vector<4x128xf32>
    %cst_26 = arith.constant 1.000000e+00 : f32
    %121 = vector.broadcast %cst_26 : f32 to vector<4x128xf32>
    %122 = arith.addf %121, %120 : vector<4x128xf32>
    %123 = arith.divf %121, %122 : vector<4x128xf32>
    %124 = arith.select %12, %118, %123 : vector<4x128xi1>, vector<4x128xf32>
    %125 = vector.extract_strided_slice %124 {offsets = [0, 0], sizes = [4, 32], strides = [1, 1]} : vector<4x128xf32> to vector<4x32xf32>
    %126 = vector.extract_strided_slice %124 {offsets = [0, 32], sizes = [4, 32], strides = [1, 1]} : vector<4x128xf32> to vector<4x32xf32>
    %127 = vector.extract_strided_slice %124 {offsets = [0, 64], sizes = [4, 32], strides = [1, 1]} : vector<4x128xf32> to vector<4x32xf32>
    %128 = vector.extract_strided_slice %124 {offsets = [0, 96], sizes = [4, 32], strides = [1, 1]} : vector<4x128xf32> to vector<4x32xf32>
    %129 = arith.mulf %126, %111 : vector<4x32xf32>
    %130 = arith.mulf %125, %127 : vector<4x32xf32>
    %131 = arith.addf %129, %130 : vector<4x32xf32>
    %132 = math.tanh %131 : vector<4x32xf32>
    %133 = arith.mulf %128, %132 : vector<4x32xf32>
    %c20 = arith.constant 20 : index
    %c0_27 = arith.constant 0 : index
    %134 = vector.load %arg7[%c20, %c0_27] : memref<32x32xf32, #tpu.memory_space<vmem>>, vector<4x32xf32>
    tpu.vector_store %arg7[%c20, %c0_27], %133 {strides = array<i32>} : memref<32x32xf32, #tpu.memory_space<vmem>>, vector<4x32xf32>,
    %135 = vector.extract_strided_slice %5 {offsets = [24, 0], sizes = [4, 128], strides = [1, 1]} : vector<32x128xf32> to vector<4x128xf32>
    %cst_28 = arith.constant dense<0.000000e+00> : vector<4x128xf32>
    %136 = tpu.matmul %133, %6, %cst_28 {dimension_numbers = #tpu.dot_dimension_numbers<[1], [0], [0], [1], [0, 0, 1, 1], [], []>} : vector<4x32xf32>, vector<32x128xf32>, vector<4x128xf32> -> vector<4x128xf32>
    %137 = arith.addf %135, %136 : vector<4x128xf32>
    %138 = math.tanh %137 : vector<4x128xf32>
    %139 = arith.negf %137 : vector<4x128xf32>
    %140 = math.exp %139 : vector<4x128xf32>
    %cst_29 = arith.constant 1.000000e+00 : f32
    %141 = vector.broadcast %cst_29 : f32 to vector<4x128xf32>
    %142 = arith.addf %141, %140 : vector<4x128xf32>
    %143 = arith.divf %141, %142 : vector<4x128xf32>
    %144 = arith.select %12, %138, %143 : vector<4x128xi1>, vector<4x128xf32>
    %145 = vector.extract_strided_slice %144 {offsets = [0, 0], sizes = [4, 32], strides = [1, 1]} : vector<4x128xf32> to vector<4x32xf32>
    %146 = vector.extract_strided_slice %144 {offsets = [0, 32], sizes = [4, 32], strides = [1, 1]} : vector<4x128xf32> to vector<4x32xf32>
    %147 = vector.extract_strided_slice %144 {offsets = [0, 64], sizes = [4, 32], strides = [1, 1]} : vector<4x128xf32> to vector<4x32xf32>
    %148 = vector.extract_strided_slice %144 {offsets = [0, 96], sizes = [4, 32], strides = [1, 1]} : vector<4x128xf32> to vector<4x32xf32>
    %149 = arith.mulf %146, %131 : vector<4x32xf32>
    %150 = arith.mulf %145, %147 : vector<4x32xf32>
    %151 = arith.addf %149, %150 : vector<4x32xf32>
    %152 = math.tanh %151 : vector<4x32xf32>
    %153 = arith.mulf %148, %152 : vector<4x32xf32>
    %c24 = arith.constant 24 : index
    %c0_30 = arith.constant 0 : index
    %154 = vector.load %arg7[%c24, %c0_30] : memref<32x32xf32, #tpu.memory_space<vmem>>, vector<4x32xf32>
    tpu.vector_store %arg7[%c24, %c0_30], %153 {strides = array<i32>} : memref<32x32xf32, #tpu.memory_space<vmem>>, vector<4x32xf32>,
    %155 = vector.extract_strided_slice %5 {offsets = [28, 0], sizes = [4, 128], strides = [1, 1]} : vector<32x128xf32> to vector<4x128xf32>
    %cst_31 = arith.constant dense<0.000000e+00> : vector<4x128xf32>
    %156 = tpu.matmul %153, %6, %cst_31 {dimension_numbers = #tpu.dot_dimension_numbers<[1], [0], [0], [1], [0, 0, 1, 1], [], []>} : vector<4x32xf32>, vector<32x128xf32>, vector<4x128xf32> -> vector<4x128xf32>
    %157 = arith.addf %155, %156 : vector<4x128xf32>
    %158 = math.tanh %157 : vector<4x128xf32>
    %159 = arith.negf %157 : vector<4x128xf32>
    %160 = math.exp %159 : vector<4x128xf32>
    %cst_32 = arith.constant 1.000000e+00 : f32
    %161 = vector.broadcast %cst_32 : f32 to vector<4x128xf32>
    %162 = arith.addf %161, %160 : vector<4x128xf32>
    %163 = arith.divf %161, %162 : vector<4x128xf32>
    %164 = arith.select %12, %158, %163 : vector<4x128xi1>, vector<4x128xf32>
    %165 = vector.extract_strided_slice %164 {offsets = [0, 0], sizes = [4, 32], strides = [1, 1]} : vector<4x128xf32> to vector<4x32xf32>
    %166 = vector.extract_strided_slice %164 {offsets = [0, 32], sizes = [4, 32], strides = [1, 1]} : vector<4x128xf32> to vector<4x32xf32>
    %167 = vector.extract_strided_slice %164 {offsets = [0, 64], sizes = [4, 32], strides = [1, 1]} : vector<4x128xf32> to vector<4x32xf32>
    %168 = vector.extract_strided_slice %164 {offsets = [0, 96], sizes = [4, 32], strides = [1, 1]} : vector<4x128xf32> to vector<4x32xf32>
    %169 = arith.mulf %166, %151 : vector<4x32xf32>
    %170 = arith.mulf %165, %167 : vector<4x32xf32>
    %171 = arith.addf %169, %170 : vector<4x32xf32>
    %172 = math.tanh %171 : vector<4x32xf32>
    %173 = arith.mulf %168, %172 : vector<4x32xf32>
    %c28 = arith.constant 28 : index
    %c0_33 = arith.constant 0 : index
    %174 = vector.load %arg7[%c28, %c0_33] : memref<32x32xf32, #tpu.memory_space<vmem>>, vector<4x32xf32>
    tpu.vector_store %arg7[%c28, %c0_33], %173 {strides = array<i32>} : memref<32x32xf32, #tpu.memory_space<vmem>>, vector<4x32xf32>,
    %c0_34 = arith.constant 0 : index
    %c0_35 = arith.constant 0 : index
    %175 = vector.load %arg7[%c0_34, %c0_35] : memref<32x32xf32, #tpu.memory_space<vmem>>, vector<32x32xf32>
    %c0_36 = arith.constant 0 : index
    %c0_37 = arith.constant 0 : index
    %176 = vector.load %arg4[%c0_36, %c0_37] : memref<32x128xf32, #tpu.memory_space<vmem>>, vector<32x128xf32>
    %cst_38 = arith.constant dense<0.000000e+00> : vector<32x128xf32>
    %177 = tpu.matmul %175, %176, %cst_38 {dimension_numbers = #tpu.dot_dimension_numbers<[1], [0], [0], [1], [0, 0, 1, 1], [], []>} : vector<32x32xf32>, vector<32x128xf32>, vector<32x128xf32> -> vector<32x128xf32>
    %c0_39 = arith.constant 0 : index
    %c0_40 = arith.constant 0 : index
    %178 = vector.load %arg5[%c0_39, %c0_40] : memref<1x128xf32, #tpu.memory_space<vmem>>, vector<1x128xf32>
    %179 = vector.broadcast %178 : vector<1x128xf32> to vector<32x128xf32>
    %180 = arith.addf %177, %179 : vector<32x128xf32>
    %181 = tpu.iota {dimensions = array<i32: 1>} : vector<32x128xi32>
    %c5_i32 = arith.constant 5 : i32
    %182 = vector.broadcast %c5_i32 : i32 to vector<32x128xi32>
    %183 = arith.cmpi slt, %181, %182 : vector<32x128xi32>
    %c5_i32_41 = arith.constant 5 : i32
    %184 = vector.broadcast %c5_i32_41 : i32 to vector<32x128xi32>
    %185 = arith.cmpi sge, %181, %184 : vector<32x128xi32>
    %c15_i32 = arith.constant 15 : i32
    %186 = vector.broadcast %c15_i32 : i32 to vector<32x128xi32>
    %187 = arith.cmpi slt, %181, %186 : vector<32x128xi32>
    %188 = arith.andi %185, %187 : vector<32x128xi1>
    %c15_i32_42 = arith.constant 15 : i32
    %189 = vector.broadcast %c15_i32_42 : i32 to vector<32x128xi32>
    %190 = arith.cmpi sge, %181, %189 : vector<32x128xi32>
    %c25_i32 = arith.constant 25 : i32
    %191 = vector.broadcast %c25_i32 : i32 to vector<32x128xi32>
    %192 = arith.cmpi slt, %181, %191 : vector<32x128xi32>
    %193 = arith.andi %190, %192 : vector<32x128xi1>
    %c25_i32_43 = arith.constant 25 : i32
    %194 = vector.broadcast %c25_i32_43 : i32 to vector<32x128xi32>
    %195 = arith.cmpi sge, %181, %194 : vector<32x128xi32>
    %c30_i32 = arith.constant 30 : i32
    %196 = vector.broadcast %c30_i32 : i32 to vector<32x128xi32>
    %197 = arith.cmpi slt, %181, %196 : vector<32x128xi32>
    %198 = arith.andi %195, %197 : vector<32x128xi1>
    %cst_44 = arith.constant 0xFF800000 : f32
    %199 = vector.broadcast %cst_44 : f32 to vector<32x128xf32>
    %200 = arith.select %183, %180, %199 : vector<32x128xi1>, vector<32x128xf32>
    %cst_45 = arith.constant dense<0xFF800000> : vector<32xf32>
    %201 = vector.multi_reduction <maximumf>, %200, %cst_45 [1] : vector<32x128xf32> to vector<32xf32>
    %202 = vector.shape_cast %201 : vector<32xf32> to vector<32x1xf32>
    %203 = vector.broadcast %202 : vector<32x1xf32> to vector<32x128xf32>
    %204 = arith.subf %200, %203 : vector<32x128xf32>
    %205 = math.exp %204 : vector<32x128xf32>
    %cst_46 = arith.constant dense<0.000000e+00> : vector<32xf32>
    %206 = vector.multi_reduction <add>, %205, %cst_46 [1] : vector<32x128xf32> to vector<32xf32>
    %207 = vector.shape_cast %206 : vector<32xf32> to vector<32x1xf32>
    %208 = vector.broadcast %207 : vector<32x1xf32> to vector<32x128xf32>
    %209 = arith.divf %205, %208 : vector<32x128xf32>
    %210 = math.exp %180 : vector<32x128xf32>
    %211 = math.tanh %180 : vector<32x128xf32>
    %cst_47 = arith.constant 0.000000e+00 : f32
    %212 = vector.broadcast %cst_47 : f32 to vector<32x128xf32>
    %213 = arith.select %198, %211, %212 : vector<32x128xi1>, vector<32x128xf32>
    %214 = arith.select %193, %180, %213 : vector<32x128xi1>, vector<32x128xf32>
    %215 = arith.select %188, %210, %214 : vector<32x128xi1>, vector<32x128xf32>
    %216 = arith.select %183, %209, %215 : vector<32x128xi1>, vector<32x128xf32>
    %c0_48 = arith.constant 0 : index
    %c0_49 = arith.constant 0 : index
    %217 = vector.load %arg6[%c0_48, %c0_49] : memref<32x128xf32, #tpu.memory_space<vmem>>, vector<32x128xf32>
    tpu.vector_store %arg6[%c0_48, %c0_49], %216 {strides = array<i32>} : memref<32x128xf32, #tpu.memory_space<vmem>>, vector<32x128xf32>,
    return
  }
}

</mosaic_0001>

<llo_original>
// kernel: lstm_mdn_forward.1
$region0: #{lstm_mdn_forward.1}
  #allocation0 [shape = 'u32[]', space=smem, size = 0x4, offset = 0x4, fixed_abs, tag = 'smem constant byte address 0x4 - core index']
  #allocation1 [shape = 'u32[72,128]{1,0:T(1,128)}', space=vmem, size = 0x9000, scoped, tag = 'internal scratch']
  #allocation2 [shape = 'f32[32,32]{1,0:T(8,128)}', space=vmem, size = 0x4000, scoped, tag = 'scratch operand']
  %s0 = inlined_call_operand.vmem [shape: f32[32,2], index: 0, kind: input, shape index: {}]
  %s1 = inlined_call_operand.vmem [shape: f32[2,128], index: 1, kind: input, shape index: {}]
  %s2 = inlined_call_operand.vmem [shape: f32[32,128], index: 2, kind: input, shape index: {}]
  %s3 = inlined_call_operand.vmem [shape: f32[1,128], index: 3, kind: input, shape index: {}]
  %s4 = inlined_call_operand.hbm [shape: f32[32,128], index: 4, kind: input, shape index: {}]
  %s5 = inlined_call_operand.vmem [shape: f32[1,128], index: 5, kind: input, shape index: {}]
  %s6 = inlined_call_operand.vmem [shape: f32[32,128], index: 6, kind: output, shape index: {}]
  %s7 = sld [smem:[#allocation0]]
  $region38: #{lstm_mdn_forward.1} parent=0
    _
  %s9 = ssub.s32 1, %s7
  %s10 = scalar_select 0, %s9, %s7
  $region1: #{lstm_mdn_forward.1} parent=0
    #allocation3 [shape = 'u8[16384]{0}', space=vmem, size = 0x4000, scoped, tag = 'input window, operand 4, single buffered']
    #allocation4 [shape = 's32[1]{0}', space=sflag, size = 0x4, scoped, tag = 'scoped memory for lstm_mdn_forward.1']
    %11 = vsyncpa [#allocation4], 0
    // Predicated region
    $region2: #{lstm_mdn_forward.1} parent=1 // pred_check
      _
    $region3: #{lstm_mdn_forward.1} parent=1 // pred_check_branch
      %13 = sbr.rel (0) target = $region5
    $region4: #{lstm_mdn_forward.1} parent=1 // pred_region
      _
    $region5: #{lstm_mdn_forward.1} parent=1 // pred_fallthru
      _
    // Predicated region
    $region6: #{lstm_mdn_forward.1} parent=1 // pred_check
      _
    $region7: #{lstm_mdn_forward.1} parent=1 // pred_check_branch
      %15 = sbr.rel (0) target = $region9
    $region8: #{lstm_mdn_forward.1} parent=1 // pred_region
      _
    $region9: #{lstm_mdn_forward.1} parent=1 // pred_fallthru
      _
    // Predicated region
    $region10: #{lstm_mdn_forward.1} parent=1 // pred_check
      _
    $region11: #{lstm_mdn_forward.1} parent=1 // pred_check_branch
      %17 = sbr.rel (0) target = $region13
    $region12: #{lstm_mdn_forward.1} parent=1 // pred_region
      _
    $region13: #{lstm_mdn_forward.1} parent=1 // pred_fallthru
      _
    // Predicated region
    $region14: #{lstm_mdn_forward.1} parent=1 // pred_check
      _
    $region15: #{lstm_mdn_forward.1} parent=1 // pred_check_branch
      %19 = sbr.rel (0) target = $region17
    $region16: #{lstm_mdn_forward.1} parent=1 // pred_region
      _
    $region17: #{lstm_mdn_forward.1} parent=1 // pred_fallthru
      _
    // Predicated region
    $region18: #{lstm_mdn_forward.1} parent=1 // pred_check
      _
    $region19: #{lstm_mdn_forward.1} parent=1 // pred_check_branch
      %21 = sbr.rel (0) target = $region21
    $region20: #{lstm_mdn_forward.1} parent=1 // pred_region
      %23 = vsyncadd [#allocation4], 0
      %s24 = sshll.u32 %s4, 4
      %s25 = int_to_ptr.hbm [resolvable:$true] %s24
      %s26 = sshll.u32 [#allocation3], 4
      %s27 = int_to_ptr.vmem [resolvable:$true] %s26
      %32 = dma.hbm_to_vmem [thread:$0]  %s25, 512, %s27, [#allocation4], 128, 128, 8
    $region21: #{lstm_mdn_forward.1} parent=1 // pred_fallthru
      _
    // Predicated region
    $region22: #{lstm_mdn_forward.1} parent=1 // pred_check
      _
    $region23: #{lstm_mdn_forward.1} parent=1 // pred_check_branch
      %34 = sbr.rel (0) target = $region25
    $region24: #{lstm_mdn_forward.1} parent=1 // pred_region
      _
    $region25: #{lstm_mdn_forward.1} parent=1 // pred_fallthru
      _
    // Predicated region
    $region26: #{lstm_mdn_forward.1} parent=1 // pred_check
      _
    $region27: #{lstm_mdn_forward.1} parent=1 // pred_check_branch
      %36 = sbr.rel (0) target = $region29
    $region28: #{lstm_mdn_forward.1} parent=1 // pred_region
      %38 = dma.done [#allocation4], 512
    $region29: #{lstm_mdn_forward.1} parent=1 // pred_fallthru
      _
    %v39 = vld [vmem:[%s0] sm:$0xff]
    %v40 = vld [vmem:[%s0 + $0x8] sm:$0xff]
    %v41 = vld [vmem:[%s0 + $0x10] sm:$0xff]
    %v42 = vld [vmem:[%s0 + $0x18] sm:$0xff]
    %v43 = vld [vmem:[%s1] sm:$0x3]
    %v44 = vld [vmem:[%s3] sm:$0x1]
    %v46 = vperm.slane %v44, 0
    %vm48 = vcmask 15360
    %v50 = vsel %vm48, %v39, 0
    %v53 = vsel %vm48, %v40, 0
    %v56 = vsel %vm48, %v41, 0
    %v59 = vsel %vm48, %v42, 0
    %vm61 = vcmask 1041408
    %v63 = vsel %vm61, %v43, 0
    %65 = vmatpush.msra.mxu0 0.0
    %66 = vmatpush.msra.mxu0 0.0
    %67 = vmatpush.msra.mxu0 0.0
    %68 = vmatpush.msra.mxu0 0.0
    %69 = vmatpush.msra.mxu0 0.0
    %70 = vmatpush.msra.mxu0 0.0
    %71 = vmatpush.msra.mxu0 0.0
    %72 = vmatpush.msra.mxu0 0.0
    %73 = vmatpush.msra.mxu0 0.0
    %74 = vmatpush.msra.mxu0 0.0
    %75 = vmatpush.msra.mxu0 0.0
    %76 = vmatpush.msra.mxu0 0.0
    %77 = vmatpush.msra.mxu0 0.0
    %78 = vmatpush.msra.mxu0 0.0
    %79 = vmatpush.msra.mxu0 0.0
    %80 = vmatpush.msra.mxu0 %v63
    %81 = vmatmul.f32.gmra.mxu0 %v50
    %v82 = vpop.f32.mrf.mxu0
    %v83 = vadd.f32 %v46, %v82
    %84 = vmatmul.f32.gmra.mxu0 %v53
    %v85 = vpop.f32.mrf.mxu0
    %v86 = vadd.f32 %v46, %v85
    %87 = vmatmul.f32.gmra.mxu0 %v56
    %v88 = vpop.f32.mrf.mxu0
    %v89 = vadd.f32 %v46, %v88
    %90 = vmatmul.f32.gmra.mxu0 %v59
    %v91 = vpop.f32.mrf.mxu0
    %v92 = vadd.f32 %v46, %v91
    %93 = vdwg.mxu0
    %v94 = vld [vmem:[%s2] sm:$0xff]
    %v95 = vld [vmem:[%s2 + $0x8] sm:$0xff]
    %v96 = vld [vmem:[%s2 + $0x10] sm:$0xff]
    %v97 = vld [vmem:[%s2 + $0x18] sm:$0xff]
    %v98 = vlaneseq
    %v99 = vand.u32 %v98, 127
    %vm100 = vcmp.ge.s32.totalorder %v99, 64
    %vm101 = vcmp.lt.s32.totalorder %v99, 96
    %vm102 = vmand %vm100, %vm101
    %vm103 = vcmask 261120
    %v105 = vsel %vm103, 0.0, 0
    %107 = vmatpush.msra.mxu0 0.0
    %108 = vmatpush.msra.mxu0 0.0
    %109 = vmatpush.msra.mxu0 0.0
    %110 = vmatpush.msra.mxu0 0.0
    %111 = vmatpush.msra.mxu0 0.0
    %112 = vmatpush.msra.mxu0 0.0
    %113 = vmatpush.msra.mxu0 0.0
    %114 = vmatpush.msra.mxu0 0.0
    %115 = vmatpush.msra.mxu0 0.0
    %116 = vmatpush.msra.mxu0 0.0
    %117 = vmatpush.msra.mxu0 0.0
    %118 = vmatpush.msra.mxu0 0.0
    %119 = vmatpush.msra.mxu0 %v97
    %120 = vmatpush.msra.mxu0 %v96
    %121 = vmatpush.msra.mxu0 %v95
    %122 = vmatpush.msra.mxu0 %v94
    %123 = vmatmul.f32.gmra.mxu0 %v105
    %v124 = vpop.f32.mrf.mxu0
    %v125 = vadd.f32 0.0, %v124
    %126 = vdwg.mxu0
    %v127 = vadd.f32 %v83, %v125
    %v128 = vtanh.pop %v127
    %v129 = vxor.u32 %v127, 2147483648
    %v130 = vmul.f32 %v129, 1.442695
    %v131 = vpow.pop %v130
    %v132 = vadd.f32 %v131, 1.0
    %v133 = vrcp.pop %v132
    %v134 = vmul.f32 %v132, %v133
    %v135 = vsub.f32 1.0, %v134
    %v136 = vmul.f32 %v133, %v135
    %v137 = vadd.f32 %v133, %v136
    %vm138 = vweird.f32 %v132
    %vm139 = vweird.f32 %v133
    %vm140 = vmor %vm138, %vm139
    %v141 = vsel %vm140, %v133, %v137
    %v142 = vand.u32 2147483647, %v132
    %vm143 = vcmp.eq.f32.partialorder %v142, 8.507059e+37
    %v144 = vand.u32 %v132, 2147483648
    %v145 = vor.u32 1.1754944e-38, %v144
    %v146 = vsel %vm143, %v145, %v141
    %v147 = vmul.f32 1.0, %v146
    %v148 = vsel %vm102, %v128, %v147
    %v149 = vmul.f32 %v148, 0.0
    %151 = vrot.lane.b32.xlu0 %v148, 64
    %v152 = vpop.permute.xlu0 %151
    %v154 = vmul.f32 %v148, %v152
    %156 = vrot.lane.b32.xlu0 %v154, 32
    %v157 = vpop.permute.xlu0 %156
    %v159 = vadd.f32 %v149, %v157
    %v160 = vtanh.pop %v159
    %162 = vrot.lane.b32.xlu0 %v160, 64
    %v163 = vpop.permute.xlu0 %162
    %v165 = vmul.f32 %v148, %v163
    %167 = vrot.lane.b32.xlu0 %v165, 32
    %v168 = vpop.permute.xlu0 %167
    %vm170 = vcmask 257024
    %171 = vst.msk [vmem:[#allocation2] sm:$0xf] %vm170, %v168
    %v172 = vsel %vm103, %v168, 0
    %174 = vmatpush.msra.mxu0 0.0
    %175 = vmatpush.msra.mxu0 0.0
    %176 = vmatpush.msra.mxu0 0.0
    %177 = vmatpush.msra.mxu0 0.0
    %178 = vmatpush.msra.mxu0 0.0
    %179 = vmatpush.msra.mxu0 0.0
    %180 = vmatpush.msra.mxu0 0.0
    %181 = vmatpush.msra.mxu0 0.0
    %182 = vmatpush.msra.mxu0 0.0
    %183 = vmatpush.msra.mxu0 0.0
    %184 = vmatpush.msra.mxu0 0.0
    %185 = vmatpush.msra.mxu0 0.0
    %186 = vmatpush.msra.mxu0 %v97
    %187 = vmatpush.msra.mxu0 %v96
    %188 = vmatpush.msra.mxu0 %v95
    %189 = vmatpush.msra.mxu0 %v94
    %190 = vmatmul.f32.gmra.mxu0 %v172
    %v191 = vpop.f32.mrf.mxu0
    %v192 = vadd.f32 0.0, %v191
    %193 = vdwg.mxu0
    %v195 = vrot.slane %v192, 4
    %v197 = vadd.f32 %v83, %v195
    %v198 = vtanh.pop %v197
    %v199 = vxor.u32 %v197, 2147483648
    %v200 = vmul.f32 %v199, 1.442695
    %v201 = vpow.pop %v200
    %v202 = vadd.f32 %v201, 1.0
    %v203 = vrcp.pop %v202
    %v204 = vmul.f32 %v202, %v203
    %v205 = vsub.f32 1.0, %v204
    %v206 = vmul.f32 %v203, %v205
    %v207 = vadd.f32 %v203, %v206
    %vm208 = vweird.f32 %v202
    %vm209 = vweird.f32 %v203
    %vm210 = vmor %vm208, %vm209
    %v211 = vsel %vm210, %v203, %v207
    %v212 = vand.u32 2147483647, %v202
    %vm213 = vcmp.eq.f32.partialorder %v212, 8.507059e+37
    %v214 = vand.u32 %v202, 2147483648
    %v215 = vor.u32 1.1754944e-38, %v214
    %v216 = vsel %vm213, %v215, %v211
    %v217 = vmul.f32 1.0, %v216
    %v218 = vsel %vm102, %v198, %v217
    %v220 = vrot.slane %v159, 4
    %v222 = vmul.f32 %v218, %v220
    %224 = vrot.lane.b32.xlu0 %v218, 64
    %v225 = vpop.permute.xlu0 %224
    %v227 = vmul.f32 %v218, %v225
    %229 = vrot.lane.b32.xlu0 %v227, 32
    %v230 = vpop.permute.xlu0 %229
    %v232 = vadd.f32 %v222, %v230
    %v233 = vtanh.pop %v232
    %235 = vrot.lane.b32.xlu0 %v233, 64
    %v236 = vpop.permute.xlu0 %235
    %v238 = vmul.f32 %v218, %v236
    %240 = vrot.lane.b32.xlu0 %v238, 32
    %v241 = vpop.permute.xlu0 %240
    %vm243 = vcmask 261124
    %244 = vst.msk [vmem:[#allocation2] sm:$0xf0] %vm243, %v241
    %v245 = vrot.slane %v238, 4
    %246 = vrot.lane.b32.xlu0 %v245, 32
    %v247 = vpop.permute.xlu0 %246
    %v248 = vsel %vm103, %v247, 0
    %250 = vmatpush.msra.mxu0 0.0
    %251 = vmatpush.msra.mxu0 0.0
    %252 = vmatpush.msra.mxu0 0.0
    %253 = vmatpush.msra.mxu0 0.0
    %254 = vmatpush.msra.mxu0 0.0
    %255 = vmatpush.msra.mxu0 0.0
    %256 = vmatpush.msra.mxu0 0.0
    %257 = vmatpush.msra.mxu0 0.0
    %258 = vmatpush.msra.mxu0 0.0
    %259 = vmatpush.msra.mxu0 0.0
    %260 = vmatpush.msra.mxu0 0.0
    %261 = vmatpush.msra.mxu0 0.0
    %262 = vmatpush.msra.mxu0 %v97
    %263 = vmatpush.msra.mxu0 %v96
    %264 = vmatpush.msra.mxu0 %v95
    %265 = vmatpush.msra.mxu0 %v94
    %266 = vmatmul.f32.gmra.mxu0 %v248
    %v267 = vpop.f32.mrf.mxu0
    %v268 = vadd.f32 0.0, %v267
    %269 = vdwg.mxu0
    %v270 = vadd.f32 %v86, %v268
    %v271 = vtanh.pop %v270
    %v272 = vxor.u32 %v270, 2147483648
    %v273 = vmul.f32 %v272, 1.442695
    %v274 = vpow.pop %v273
    %v275 = vadd.f32 %v274, 1.0
    %v276 = vrcp.pop %v275
    %v277 = vmul.f32 %v275, %v276
    %v278 = vsub.f32 1.0, %v277
    %v279 = vmul.f32 %v276, %v278
    %v280 = vadd.f32 %v276, %v279
    %vm281 = vweird.f32 %v275
    %vm282 = vweird.f32 %v276
    %vm283 = vmor %vm281, %vm282
    %v284 = vsel %vm283, %v276, %v280
    %v285 = vand.u32 2147483647, %v275
    %vm286 = vcmp.eq.f32.partialorder %v285, 8.507059e+37
    %v287 = vand.u32 %v275, 2147483648
    %v288 = vor.u32 1.1754944e-38, %v287
    %v289 = vsel %vm286, %v288, %v284
    %v290 = vmul.f32 1.0, %v289
    %v291 = vsel %vm102, %v271, %v290
    %v293 = vrot.slane %v232, 4
    %v295 = vmul.f32 %v291, %v293
    %297 = vrot.lane.b32.xlu0 %v291, 64
    %v298 = vpop.permute.xlu0 %297
    %v300 = vmul.f32 %v291, %v298
    %302 = vrot.lane.b32.xlu0 %v300, 32
    %v303 = vpop.permute.xlu0 %302
    %v305 = vadd.f32 %v295, %v303
    %v306 = vtanh.pop %v305
    %308 = vrot.lane.b32.xlu0 %v306, 64
    %v309 = vpop.permute.xlu0 %308
    %v311 = vmul.f32 %v291, %v309
    %313 = vrot.lane.b32.xlu0 %v311, 32
    %v314 = vpop.permute.xlu0 %313
    %316 = vst.msk [vmem:[#allocation2 + $0x8] sm:$0xf] %vm170, %v314
    %v317 = vsel %vm103, %v314, 0
    %319 = vmatpush.msra.mxu0 0.0
    %320 = vmatpush.msra.mxu0 0.0
    %321 = vmatpush.msra.mxu0 0.0
    %322 = vmatpush.msra.mxu0 0.0
    %323 = vmatpush.msra.mxu0 0.0
    %324 = vmatpush.msra.mxu0 0.0
    %325 = vmatpush.msra.mxu0 0.0
    %326 = vmatpush.msra.mxu0 0.0
    %327 = vmatpush.msra.mxu0 0.0
    %328 = vmatpush.msra.mxu0 0.0
    %329 = vmatpush.msra.mxu0 0.0
    %330 = vmatpush.msra.mxu0 0.0
    %331 = vmatpush.msra.mxu0 %v97
    %332 = vmatpush.msra.mxu0 %v96
    %333 = vmatpush.msra.mxu0 %v95
    %334 = vmatpush.msra.mxu0 %v94
    %335 = vmatmul.f32.gmra.mxu0 %v317
    %v336 = vpop.f32.mrf.mxu0
    %v337 = vadd.f32 0.0, %v336
    %338 = vdwg.mxu0
    %v340 = vrot.slane %v337, 4
    %v342 = vadd.f32 %v86, %v340
    %v343 = vtanh.pop %v342
    %v344 = vxor.u32 %v342, 2147483648
    %v345 = vmul.f32 %v344, 1.442695
    %v346 = vpow.pop %v345
    %v347 = vadd.f32 %v346, 1.0
    %v348 = vrcp.pop %v347
    %v349 = vmul.f32 %v347, %v348
    %v350 = vsub.f32 1.0, %v349
    %v351 = vmul.f32 %v348, %v350
    %v352 = vadd.f32 %v348, %v351
    %vm353 = vweird.f32 %v347
    %vm354 = vweird.f32 %v348
    %vm355 = vmor %vm353, %vm354
    %v356 = vsel %vm355, %v348, %v352
    %v357 = vand.u32 2147483647, %v347
    %vm358 = vcmp.eq.f32.partialorder %v357, 8.507059e+37
    %v359 = vand.u32 %v347, 2147483648
    %v360 = vor.u32 1.1754944e-38, %v359
    %v361 = vsel %vm358, %v360, %v356
    %v362 = vmul.f32 1.0, %v361
    %v363 = vsel %vm102, %v343, %v362
    %v365 = vrot.slane %v305, 4
    %v367 = vmul.f32 %v363, %v365
    %369 = vrot.lane.b32.xlu0 %v363, 64
    %v370 = vpop.permute.xlu0 %369
    %v372 = vmul.f32 %v363, %v370
    %374 = vrot.lane.b32.xlu0 %v372, 32
    %v375 = vpop.permute.xlu0 %374
    %v377 = vadd.f32 %v367, %v375
    %v378 = vtanh.pop %v377
    %380 = vrot.lane.b32.xlu0 %v378, 64
    %v381 = vpop.permute.xlu0 %380
    %v383 = vmul.f32 %v363, %v381
    %385 = vrot.lane.b32.xlu0 %v383, 32
    %v386 = vpop.permute.xlu0 %385
    %388 = vst.msk [vmem:[#allocation2 + $0x8] sm:$0xf0] %vm243, %v386
    %v389 = vrot.slane %v383, 4
    %390 = vrot.lane.b32.xlu0 %v389, 32
    %v391 = vpop.permute.xlu0 %390
    %v392 = vsel %vm103, %v391, 0
    %394 = vmatpush.msra.mxu0 0.0
    %395 = vmatpush.msra.mxu0 0.0
    %396 = vmatpush.msra.mxu0 0.0
    %397 = vmatpush.msra.mxu0 0.0
    %398 = vmatpush.msra.mxu0 0.0
    %399 = vmatpush.msra.mxu0 0.0
    %400 = vmatpush.msra.mxu0 0.0
    %401 = vmatpush.msra.mxu0 0.0
    %402 = vmatpush.msra.mxu0 0.0
    %403 = vmatpush.msra.mxu0 0.0
    %404 = vmatpush.msra.mxu0 0.0
    %405 = vmatpush.msra.mxu0 0.0
    %406 = vmatpush.msra.mxu0 %v97
    %407 = vmatpush.msra.mxu0 %v96
    %408 = vmatpush.msra.mxu0 %v95
    %409 = vmatpush.msra.mxu0 %v94
    %410 = vmatmul.f32.gmra.mxu0 %v392
    %v411 = vpop.f32.mrf.mxu0
    %v412 = vadd.f32 0.0, %v411
    %413 = vdwg.mxu0
    %v414 = vadd.f32 %v89, %v412
    %v415 = vtanh.pop %v414
    %v416 = vxor.u32 %v414, 2147483648
    %v417 = vmul.f32 %v416, 1.442695
    %v418 = vpow.pop %v417
    %v419 = vadd.f32 %v418, 1.0
    %v420 = vrcp.pop %v419
    %v421 = vmul.f32 %v419, %v420
    %v422 = vsub.f32 1.0, %v421
    %v423 = vmul.f32 %v420, %v422
    %v424 = vadd.f32 %v420, %v423
    %vm425 = vweird.f32 %v419
    %vm426 = vweird.f32 %v420
    %vm427 = vmor %vm425, %vm426
    %v428 = vsel %vm427, %v420, %v424
    %v429 = vand.u32 2147483647, %v419
    %vm430 = vcmp.eq.f32.partialorder %v429, 8.507059e+37
    %v431 = vand.u32 %v419, 2147483648
    %v432 = vor.u32 1.1754944e-38, %v431
    %v433 = vsel %vm430, %v432, %v428
    %v434 = vmul.f32 1.0, %v433
    %v435 = vsel %vm102, %v415, %v434
    %v437 = vrot.slane %v377, 4
    %v439 = vmul.f32 %v435, %v437
    %441 = vrot.lane.b32.xlu0 %v435, 64
    %v442 = vpop.permute.xlu0 %441
    %v444 = vmul.f32 %v435, %v442
    %446 = vrot.lane.b32.xlu0 %v444, 32
    %v447 = vpop.permute.xlu0 %446
    %v449 = vadd.f32 %v439, %v447
    %v450 = vtanh.pop %v449
    %452 = vrot.lane.b32.xlu0 %v450, 64
    %v453 = vpop.permute.xlu0 %452
    %v455 = vmul.f32 %v435, %v453
    %457 = vrot.lane.b32.xlu0 %v455, 32
    %v458 = vpop.permute.xlu0 %457
    %460 = vst.msk [vmem:[#allocation2 + $0x10] sm:$0xf] %vm170, %v458
    %v461 = vsel %vm103, %v458, 0
    %463 = vmatpush.msra.mxu0 0.0
    %464 = vmatpush.msra.mxu0 0.0
    %465 = vmatpush.msra.mxu0 0.0
    %466 = vmatpush.msra.mxu0 0.0
    %467 = vmatpush.msra.mxu0 0.0
    %468 = vmatpush.msra.mxu0 0.0
    %469 = vmatpush.msra.mxu0 0.0
    %470 = vmatpush.msra.mxu0 0.0
    %471 = vmatpush.msra.mxu0 0.0
    %472 = vmatpush.msra.mxu0 0.0
    %473 = vmatpush.msra.mxu0 0.0
    %474 = vmatpush.msra.mxu0 0.0
    %475 = vmatpush.msra.mxu0 %v97
    %476 = vmatpush.msra.mxu0 %v96
    %477 = vmatpush.msra.mxu0 %v95
    %478 = vmatpush.msra.mxu0 %v94
    %479 = vmatmul.f32.gmra.mxu0 %v461
    %v480 = vpop.f32.mrf.mxu0
    %v481 = vadd.f32 0.0, %v480
    %482 = vdwg.mxu0
    %v484 = vrot.slane %v481, 4
    %v486 = vadd.f32 %v89, %v484
    %v487 = vtanh.pop %v486
    %v488 = vxor.u32 %v486, 2147483648
    %v489 = vmul.f32 %v488, 1.442695
    %v490 = vpow.pop %v489
    %v491 = vadd.f32 %v490, 1.0
    %v492 = vrcp.pop %v491
    %v493 = vmul.f32 %v491, %v492
    %v494 = vsub.f32 1.0, %v493
    %v495 = vmul.f32 %v492, %v494
    %v496 = vadd.f32 %v492, %v495
    %vm497 = vweird.f32 %v491
    %vm498 = vweird.f32 %v492
    %vm499 = vmor %vm497, %vm498
    %v500 = vsel %vm499, %v492, %v496
    %v501 = vand.u32 2147483647, %v491
    %vm502 = vcmp.eq.f32.partialorder %v501, 8.507059e+37
    %v503 = vand.u32 %v491, 2147483648
    %v504 = vor.u32 1.1754944e-38, %v503
    %v505 = vsel %vm502, %v504, %v500
    %v506 = vmul.f32 1.0, %v505
    %v507 = vsel %vm102, %v487, %v506
    %v509 = vrot.slane %v449, 4
    %v511 = vmul.f32 %v507, %v509
    %513 = vrot.lane.b32.xlu0 %v507, 64
    %v514 = vpop.permute.xlu0 %513
    %v516 = vmul.f32 %v507, %v514
    %518 = vrot.lane.b32.xlu0 %v516, 32
    %v519 = vpop.permute.xlu0 %518
    %v521 = vadd.f32 %v511, %v519
    %v522 = vtanh.pop %v521
    %524 = vrot.lane.b32.xlu0 %v522, 64
    %v525 = vpop.permute.xlu0 %524
    %v527 = vmul.f32 %v507, %v525
    %529 = vrot.lane.b32.xlu0 %v527, 32
    %v530 = vpop.permute.xlu0 %529
    %532 = vst.msk [vmem:[#allocation2 + $0x10] sm:$0xf0] %vm243, %v530
    %v533 = vrot.slane %v527, 4
    %534 = vrot.lane.b32.xlu0 %v533, 32
    %v535 = vpop.permute.xlu0 %534
    %v536 = vsel %vm103, %v535, 0
    %538 = vmatpush.msra.mxu0 0.0
    %539 = vmatpush.msra.mxu0 0.0
    %540 = vmatpush.msra.mxu0 0.0
    %541 = vmatpush.msra.mxu0 0.0
    %542 = vmatpush.msra.mxu0 0.0
    %543 = vmatpush.msra.mxu0 0.0
    %544 = vmatpush.msra.mxu0 0.0
    %545 = vmatpush.msra.mxu0 0.0
    %546 = vmatpush.msra.mxu0 0.0
    %547 = vmatpush.msra.mxu0 0.0
    %548 = vmatpush.msra.mxu0 0.0
    %549 = vmatpush.msra.mxu0 0.0
    %550 = vmatpush.msra.mxu0 %v97
    %551 = vmatpush.msra.mxu0 %v96
    %552 = vmatpush.msra.mxu0 %v95
    %553 = vmatpush.msra.mxu0 %v94
    %554 = vmatmul.f32.gmra.mxu0 %v536
    %v555 = vpop.f32.mrf.mxu0
    %v556 = vadd.f32 0.0, %v555
    %557 = vdwg.mxu0
    %v558 = vadd.f32 %v92, %v556
    %v559 = vtanh.pop %v558
    %v560 = vxor.u32 %v558, 2147483648
    %v561 = vmul.f32 %v560, 1.442695
    %v562 = vpow.pop %v561
    %v563 = vadd.f32 %v562, 1.0
    %v564 = vrcp.pop %v563
    %v565 = vmul.f32 %v563, %v564
    %v566 = vsub.f32 1.0, %v565
    %v567 = vmul.f32 %v564, %v566
    %v568 = vadd.f32 %v564, %v567
    %vm569 = vweird.f32 %v563
    %vm570 = vweird.f32 %v564
    %vm571 = vmor %vm569, %vm570
    %v572 = vsel %vm571, %v564, %v568
    %v573 = vand.u32 2147483647, %v563
    %vm574 = vcmp.eq.f32.partialorder %v573, 8.507059e+37
    %v575 = vand.u32 %v563, 2147483648
    %v576 = vor.u32 1.1754944e-38, %v575
    %v577 = vsel %vm574, %v576, %v572
    %v578 = vmul.f32 1.0, %v577
    %v579 = vsel %vm102, %v559, %v578
    %v581 = vrot.slane %v521, 4
    %v583 = vmul.f32 %v579, %v581
    %585 = vrot.lane.b32.xlu0 %v579, 64
    %v586 = vpop.permute.xlu0 %585
    %v588 = vmul.f32 %v579, %v586
    %590 = vrot.lane.b32.xlu0 %v588, 32
    %v591 = vpop.permute.xlu0 %590
    %v593 = vadd.f32 %v583, %v591
    %v594 = vtanh.pop %v593
    %596 = vrot.lane.b32.xlu0 %v594, 64
    %v597 = vpop.permute.xlu0 %596
    %v599 = vmul.f32 %v579, %v597
    %601 = vrot.lane.b32.xlu0 %v599, 32
    %v602 = vpop.permute.xlu0 %601
    %604 = vst.msk [vmem:[#allocation2 + $0x18] sm:$0xf] %vm170, %v602
    %v605 = vsel %vm103, %v602, 0
    %607 = vmatpush.msra.mxu0 0.0
    %608 = vmatpush.msra.mxu0 0.0
    %609 = vmatpush.msra.mxu0 0.0
    %610 = vmatpush.msra.mxu0 0.0
    %611 = vmatpush.msra.mxu0 0.0
    %612 = vmatpush.msra.mxu0 0.0
    %613 = vmatpush.msra.mxu0 0.0
    %614 = vmatpush.msra.mxu0 0.0
    %615 = vmatpush.msra.mxu0 0.0
    %616 = vmatpush.msra.mxu0 0.0
    %617 = vmatpush.msra.mxu0 0.0
    %618 = vmatpush.msra.mxu0 0.0
    %619 = vmatpush.msra.mxu0 %v97
    %620 = vmatpush.msra.mxu0 %v96
    %621 = vmatpush.msra.mxu0 %v95
    %622 = vmatpush.msra.mxu0 %v94
    %623 = vmatmul.f32.gmra.mxu0 %v605
    %v624 = vpop.f32.mrf.mxu0
    %v625 = vadd.f32 0.0, %v624
    %626 = vdwg.mxu0
    %v628 = vrot.slane %v625, 4
    %v630 = vadd.f32 %v92, %v628
    %v631 = vtanh.pop %v630
    %v632 = vxor.u32 %v630, 2147483648
    %v633 = vmul.f32 %v632, 1.442695
    %v634 = vpow.pop %v633
    %v635 = vadd.f32 %v634, 1.0
    %v636 = vrcp.pop %v635
    %v637 = vmul.f32 %v635, %v636
    %v638 = vsub.f32 1.0, %v637
    %v639 = vmul.f32 %v636, %v638
    %v640 = vadd.f32 %v636, %v639
    %vm641 = vweird.f32 %v635
    %vm642 = vweird.f32 %v636
    %vm643 = vmor %vm641, %vm642
    %v644 = vsel %vm643, %v636, %v640
    %v645 = vand.u32 2147483647, %v635
    %vm646 = vcmp.eq.f32.partialorder %v645, 8.507059e+37
    %v647 = vand.u32 %v635, 2147483648
    %v648 = vor.u32 1.1754944e-38, %v647
    %v649 = vsel %vm646, %v648, %v644
    %v650 = vmul.f32 1.0, %v649
    %v651 = vsel %vm102, %v631, %v650
    %v653 = vrot.slane %v593, 4
    %v655 = vmul.f32 %v651, %v653
    %657 = vrot.lane.b32.xlu0 %v651, 64
    %v658 = vpop.permute.xlu0 %657
    %v660 = vmul.f32 %v651, %v658
    %662 = vrot.lane.b32.xlu0 %v660, 32
    %v663 = vpop.permute.xlu0 %662
    %v665 = vadd.f32 %v655, %v663
    %v666 = vtanh.pop %v665
    %668 = vrot.lane.b32.xlu0 %v666, 64
    %v669 = vpop.permute.xlu0 %668
    %v671 = vmul.f32 %v651, %v669
    %673 = vrot.lane.b32.xlu0 %v671, 32
    %v674 = vpop.permute.xlu0 %673
    %676 = vst.msk [vmem:[#allocation2 + $0x18] sm:$0xf0] %vm243, %v674
    %v677 = vld [vmem:[#allocation2] sm:$0xff]
    %v678 = vld [vmem:[#allocation2 + $0x8] sm:$0xff]
    %v679 = vld [vmem:[#allocation2 + $0x10] sm:$0xff]
    %v680 = vld [vmem:[#allocation2 + $0x18] sm:$0xff]
    %v681 = vld [vmem:[#allocation3] sm:$0xff]
    %v682 = vld [vmem:[#allocation3 + $0x8] sm:$0xff]
    %v683 = vld [vmem:[#allocation3 + $0x10] sm:$0xff]
    %v684 = vld [vmem:[#allocation3 + $0x18] sm:$0xff]
    %v685 = vld [vmem:[%s5] sm:$0x1]
    %v687 = vperm.slane %v685, 0
    %v690 = vsel %vm103, %v677, 0
    %v693 = vsel %vm103, %v678, 0
    %v696 = vsel %vm103, %v679, 0
    %v699 = vsel %vm103, %v680, 0
    %701 = vmatpush.msra.mxu0 0.0
    %702 = vmatpush.msra.mxu0 0.0
    %703 = vmatpush.msra.mxu0 0.0
    %704 = vmatpush.msra.mxu0 0.0
    %705 = vmatpush.msra.mxu0 0.0
    %706 = vmatpush.msra.mxu0 0.0
    %707 = vmatpush.msra.mxu0 0.0
    %708 = vmatpush.msra.mxu0 0.0
    %709 = vmatpush.msra.mxu0 0.0
    %710 = vmatpush.msra.mxu0 0.0
    %711 = vmatpush.msra.mxu0 0.0
    %712 = vmatpush.msra.mxu0 0.0
    %713 = vmatpush.msra.mxu0 %v684
    %714 = vmatpush.msra.mxu0 %v683
    %715 = vmatpush.msra.mxu0 %v682
    %716 = vmatpush.msra.mxu0 %v681
    %717 = vmatmul.f32.gmra.mxu0 %v690
    %v718 = vpop.f32.mrf.mxu0
    %v719 = vadd.f32 %v687, %v718
    %720 = vmatmul.f32.gmra.mxu0 %v693
    %v721 = vpop.f32.mrf.mxu0
    %v722 = vadd.f32 %v687, %v721
    %723 = vmatmul.f32.gmra.mxu0 %v696
    %v724 = vpop.f32.mrf.mxu0
    %v725 = vadd.f32 %v687, %v724
    %726 = vmatmul.f32.gmra.mxu0 %v699
    %v727 = vpop.f32.mrf.mxu0
    %v728 = vadd.f32 %v687, %v727
    %729 = vdwg.mxu0
    %vm730 = vcmp.lt.s32.totalorder %v99, 5
    %vm731 = vcmp.ge.s32.totalorder %v99, 5
    %vm732 = vcmp.lt.s32.totalorder %v99, 15
    %vm733 = vmand %vm731, %vm732
    %vm734 = vcmp.ge.s32.totalorder %v99, 15
    %vm735 = vcmp.lt.s32.totalorder %v99, 25
    %vm736 = vmand %vm734, %vm735
    %vm737 = vcmp.ge.s32.totalorder %v99, 25
    %vm738 = vcmp.lt.s32.totalorder %v99, 30
    %vm739 = vmand %vm737, %vm738
    %v740 = vsel %vm730, %v719, -inf
    %v741 = vsel %vm730, %v722, -inf
    %v742 = vsel %vm730, %v725, -inf
    %v743 = vsel %vm730, %v728, -inf
    %744 = vmax.xlane.f32.xlu0 %v740
    %v745 = vpop.xlane.xlu0 %744
    %746 = vmax.xlane.f32.xlu0 %v741
    %v747 = vpop.xlane.xlu0 %746
    %748 = vmax.xlane.f32.xlu0 %v742
    %v749 = vpop.xlane.xlu0 %748
    %750 = vmax.xlane.f32.xlu0 %v743
    %v751 = vpop.xlane.xlu0 %750
    %v752 = vsub.f32 %v740, %v745
    %v753 = vsub.f32 %v741, %v747
    %v754 = vsub.f32 %v742, %v749
    %v755 = vsub.f32 %v743, %v751
    %v756 = vmul.f32 %v752, 1.442695
    %v757 = vpow.pop %v756
    %v758 = vmul.f32 %v753, 1.442695
    %v759 = vpow.pop %v758
    %v760 = vmul.f32 %v754, 1.442695
    %v761 = vpow.pop %v760
    %v762 = vmul.f32 %v755, 1.442695
    %v763 = vpow.pop %v762
    %764 = vadd.xlane.f32.xlu0 %v757
    %v765 = vpop.xlane.xlu0 %764
    %766 = vadd.xlane.f32.xlu0 %v759
    %v767 = vpop.xlane.xlu0 %766
    %768 = vadd.xlane.f32.xlu0 %v761
    %v769 = vpop.xlane.xlu0 %768
    %770 = vadd.xlane.f32.xlu0 %v763
    %v771 = vpop.xlane.xlu0 %770
    %v772 = vrcp.pop %v765
    %v773 = vmul.f32 %v765, %v772
    %v774 = vsub.f32 1.0, %v773
    %v775 = vmul.f32 %v772, %v774
    %v776 = vadd.f32 %v772, %v775
    %vm777 = vweird.f32 %v765
    %vm778 = vweird.f32 %v772
    %vm779 = vmor %vm777, %vm778
    %v780 = vsel %vm779, %v772, %v776
    %v781 = vand.u32 2147483647, %v765
    %vm782 = vcmp.eq.f32.partialorder %v781, 8.507059e+37
    %v783 = vand.u32 %v765, 2147483648
    %v784 = vor.u32 1.1754944e-38, %v783
    %v785 = vsel %vm782, %v784, %v780
    %v786 = vmul.f32 %v757, %v785
    %v787 = vrcp.pop %v767
    %v788 = vmul.f32 %v767, %v787
    %v789 = vsub.f32 1.0, %v788
    %v790 = vmul.f32 %v787, %v789
    %v791 = vadd.f32 %v787, %v790
    %vm792 = vweird.f32 %v767
    %vm793 = vweird.f32 %v787
    %vm794 = vmor %vm792, %vm793
    %v795 = vsel %vm794, %v787, %v791
    %v796 = vand.u32 2147483647, %v767
    %vm797 = vcmp.eq.f32.partialorder %v796, 8.507059e+37
    %v798 = vand.u32 %v767, 2147483648
    %v799 = vor.u32 1.1754944e-38, %v798
    %v800 = vsel %vm797, %v799, %v795
    %v801 = vmul.f32 %v759, %v800
    %v802 = vrcp.pop %v769
    %v803 = vmul.f32 %v769, %v802
    %v804 = vsub.f32 1.0, %v803
    %v805 = vmul.f32 %v802, %v804
    %v806 = vadd.f32 %v802, %v805
    %vm807 = vweird.f32 %v769
    %vm808 = vweird.f32 %v802
    %vm809 = vmor %vm807, %vm808
    %v810 = vsel %vm809, %v802, %v806
    %v811 = vand.u32 2147483647, %v769
    %vm812 = vcmp.eq.f32.partialorder %v811, 8.507059e+37
    %v813 = vand.u32 %v769, 2147483648
    %v814 = vor.u32 1.1754944e-38, %v813
    %v815 = vsel %vm812, %v814, %v810
    %v816 = vmul.f32 %v761, %v815
    %v817 = vrcp.pop %v771
    %v818 = vmul.f32 %v771, %v817
    %v819 = vsub.f32 1.0, %v818
    %v820 = vmul.f32 %v817, %v819
    %v821 = vadd.f32 %v817, %v820
    %vm822 = vweird.f32 %v771
    %vm823 = vweird.f32 %v817
    %vm824 = vmor %vm822, %vm823
    %v825 = vsel %vm824, %v817, %v821
    %v826 = vand.u32 2147483647, %v771
    %vm827 = vcmp.eq.f32.partialorder %v826, 8.507059e+37
    %v828 = vand.u32 %v771, 2147483648
    %v829 = vor.u32 1.1754944e-38, %v828
    %v830 = vsel %vm827, %v829, %v825
    %v831 = vmul.f32 %v763, %v830
    %v832 = vmul.f32 %v719, 1.442695
    %v833 = vpow.pop %v832
    %v834 = vmul.f32 %v722, 1.442695
    %v835 = vpow.pop %v834
    %v836 = vmul.f32 %v725, 1.442695
    %v837 = vpow.pop %v836
    %v838 = vmul.f32 %v728, 1.442695
    %v839 = vpow.pop %v838
    %v840 = vtanh.pop %v719
    %v841 = vtanh.pop %v722
    %v842 = vtanh.pop %v725
    %v843 = vtanh.pop %v728
    %v844 = vsel %vm739, %v840, 0.0
    %v845 = vsel %vm739, %v841, 0.0
    %v846 = vsel %vm739, %v842, 0.0
    %v847 = vsel %vm739, %v843, 0.0
    %v848 = vsel %vm736, %v719, %v844
    %v849 = vsel %vm736, %v722, %v845
    %v850 = vsel %vm736, %v725, %v846
    %v851 = vsel %vm736, %v728, %v847
    %v852 = vsel %vm733, %v833, %v848
    %v853 = vsel %vm733, %v835, %v849
    %v854 = vsel %vm733, %v837, %v850
    %v855 = vsel %vm733, %v839, %v851
    %v856 = vsel %vm730, %v786, %v852
    %v857 = vsel %vm730, %v801, %v853
    %v858 = vsel %vm730, %v816, %v854
    %v859 = vsel %vm730, %v831, %v855
    %860 = vst [vmem:[%s6] sm:$0xff] %v856
    %861 = vst [vmem:[%s6 + $0x8] sm:$0xff] %v857
    %862 = vst [vmem:[%s6 + $0x10] sm:$0xff] %v858
    %863 = vst [vmem:[%s6 + $0x18] sm:$0xff] %v859
    // Predicated region
    $region30: #{lstm_mdn_forward.1} parent=1 // pred_check
      _
    $region31: #{lstm_mdn_forward.1} parent=1 // pred_check_branch
      %865 = sbr.rel (0) target = $region33
    $region32: #{lstm_mdn_forward.1} parent=1 // pred_region
      _
    $region33: #{lstm_mdn_forward.1} parent=1 // pred_fallthru
      _
    // Predicated region
    $region34: #{lstm_mdn_forward.1} parent=1 // pred_check
      _
    $region35: #{lstm_mdn_forward.1} parent=1 // pred_check_branch
      %867 = sbr.rel (0) target = $region37
    $region36: #{lstm_mdn_forward.1} parent=1 // pred_region
      _
    $region37: #{lstm_mdn_forward.1} parent=1 // pred_fallthru
      _
    %868 = vsyncpa [#allocation4], 1

</llo_original>
